<compile_context>
chip_gen: v5e
topology: v5e:2x2
jax: 0.10.0
libtpu: 0.0.40
codegen_flags: <defaults>
</compile_context>

<pallas_src>
from functools import partial

import jax
import jax.numpy as jnp
import numpy as np
from jax import lax
from jax.experimental import pallas as pl
from jax.experimental.pallas import tpu as pltpu


# ---------------------------------------------------------------------------
# Hardware-aware sizing helpers
# ---------------------------------------------------------------------------

def _vmem_limit_bytes():
    """Generation-aware scoped-VMEM budget for the pallas_calls."""
    try:
        phys = int(pltpu.get_tpu_info().vmem_capacity_bytes)
    except Exception:
        phys = 0
    if phys >= 128 * 1024 * 1024:          # v4 / v5e / v6e: 128 MiB physical
        return 96 * 1024 * 1024
    if phys > 0:                           # v7x: 64 MiB physical -> ~48 MiB
        return max((phys * 3) // 4, 16 * 1024 * 1024)
    return 48 * 1024 * 1024                # unknown chip: safe on all parts


def _is_v7x():
    """Best-effort chip-generation probe (False on failure -> exact VPU path)."""
    try:
        info = pltpu.get_tpu_info()
    except Exception:
        return False
    for attr in ("chip_version", "chip_name", "name", "version"):
        val = getattr(info, attr, None)
        if val is not None and "7" in str(val):
            return True
    return False


def _round_up(v, m):
    return ((v + m - 1) // m) * m


def _pick_tiling(S, C, itemsize, vmem_limit, max_tile_bytes=None):
    """128-aligned spatial tile sized off the scoped-VMEM budget.

    Phase-2 residency is 2x input + 2x output tiles (double-buffered) plus tiny
    params, hence the // 5.  Returns (tile_s, num_tiles); tile_s * num_tiles
    may exceed S — the last tile is handled by Pallas OOB masking + an explicit
    lane mask on the reduction.
    """
    target = (vmem_limit // 5) if max_tile_bytes is None else max_tile_bytes
    per_lane = max(C * itemsize, 1)
    max_ts = max(128, (target // per_lane) // 128 * 128)
    s_aligned = _round_up(S, 128)
    if s_aligned <= max_ts:
        return s_aligned, 1
    n = pl.cdiv(s_aligned, max_ts)
    tile_s = _round_up(pl.cdiv(s_aligned, n), 128)
    return tile_s, pl.cdiv(S, tile_s)


# ---------------------------------------------------------------------------
# Kernel bodies
# ---------------------------------------------------------------------------

def _conv1x1_logits(x, wc_ref, bc_ref, conv_on_mxu):
    """Pre-sigmoid logits of the 1x1x1 spatial-SE conv: shape (1, lanes)."""
    if conv_on_mxu:
        # v7x: channel contraction on the otherwise-idle MXU frees VALU/XLU
        # slots; precision=HIGHEST keeps the sigmoid input at ~f32 accuracy.
        lin = jnp.dot(wc_ref[...], x, preferred_element_type=jnp.float32,
                      precision=lax.Precision.HIGHEST)
    else:
        # v5e/v6e: VPU broadcast-multiply + cross-sublane reduce (exact f32).
        lin = jnp.sum(x * wc_ref[...], axis=0, keepdims=True)
    return lin + bc_ref[0]


def _mask_tail(vals, lane_offset, spatial):
    """Zero lanes past the true spatial extent (OOB-padded last tile)."""
    col = lax.broadcasted_iota(jnp.int32, vals.shape, 1) + lane_offset
    return jnp.where(col < spatial, vals, 0.0)


def _gate_sums_kernel(x_ref, wc_ref, bc_ref, sum_ref, *,
                      conv_on_mxu, tile_s, spatial, has_tail):
    """Phase 1: accumulate per-(batch, channel) spatial sums of cse."""
    s_idx = pl.program_id(1)

    @pl.when(s_idx == 0)
    def _():
        sum_ref[...] = jnp.zeros_like(sum_ref)

    x = x_ref[0].astype(jnp.float32)                                   # (C, tS)
    cse = x * jax.nn.sigmoid(_conv1x1_logits(x, wc_ref, bc_ref, conv_on_mxu))
    if has_tail:
        cse = _mask_tail(cse, s_idx * tile_s, spatial)
    # TODO(synk): widen this accumulator to (C, 128) lanes and defer the
    # cross-lane reduce to a finalize step if VALU/XLU ever binds on v7x.
    sum_ref[0] += jnp.sum(cse, axis=1, keepdims=True)                  # (C, 1)


def _apply_kernel(x_ref, wc_ref, bc_ref, g_ref, o_ref, *, conv_on_mxu):
    """Phase 2: out = relu(cse * g + x), cse recomputed per lane-dense tile."""
    x = x_ref[0].astype(jnp.float32)                                   # (C, tS)
    cse = x * jax.nn.sigmoid(_conv1x1_logits(x, wc_ref, bc_ref, conv_on_mxu))
    o_ref[0] = jnp.maximum(cse * g_ref[0] + x, 0.0).astype(o_ref.dtype)


def _fused_kernel(x_ref, wc_ref, bc_ref, w1_ref, b1_ref, w2_ref, b2_ref, o_ref,
                  *, conv_on_mxu, spatial, has_tail):
    """Single-pass path: whole per-batch (C, S) slab resident in VMEM."""
    x = x_ref[0].astype(jnp.float32)                                   # (C, S_blk)
    cse = x * jax.nn.sigmoid(_conv1x1_logits(x, wc_ref, bc_ref, conv_on_mxu))
    csum = _mask_tail(cse, 0, spatial) if has_tail else cse
    z = jnp.sum(csum, axis=1, keepdims=True) * (1.0 / spatial)         # (C, 1)
    h = jnp.maximum(
        jnp.dot(w1_ref[...], z, preferred_element_type=jnp.float32) + b1_ref[...],
        0.0)                                                           # (Cr, 1)
    g = jax.nn.sigmoid(
        jnp.dot(w2_ref[...], h, preferred_element_type=jnp.float32) + b2_ref[...])  # (C, 1)
    o_ref[0] = jnp.maximum(cse * g + x, 0.0).astype(o_ref.dtype)


# ---------------------------------------------------------------------------
# Wrapper / dispatch
# ---------------------------------------------------------------------------

def channel_spatial_se_3d(x, params, *, stream_dtype=None, max_tile_bytes=None,
                          force_two_pass=False, conv_on_mxu=None):
    """x: (B, C, D, H, W) (PyTorch NCDHW). Returns the same shape.

    stream_dtype: optional narrower dtype (e.g. jnp.bfloat16) for the streamed
      x / output tiles on v6e/v7x; accumulation and gate math stay f32 and the
      output is returned in stream_dtype.  Default keeps the exact f32 path.
    """
    wc, bc, w1, b1, w2, b2 = params
    B, C, D, H, W = x.shape
    S = D * H * W
    Cr = w1.shape[0]

    if conv_on_mxu is None:
        conv_on_mxu = _is_v7x()
    vmem_limit = _vmem_limit_bytes()

    out_dtype = jnp.dtype(stream_dtype) if stream_dtype is not None else x.dtype
    itemsize = jnp.dtype(out_dtype).itemsize

    x_cs = x.reshape(B, C, S).astype(out_dtype)   # free reshape for NCDHW layout

    # conv weight layout depends on which unit performs the channel contraction
    wc_k = (wc.reshape(1, C) if conv_on_mxu else wc.reshape(C, 1)).astype(jnp.float32)
    bc_k = bc.reshape(1).astype(jnp.float32)      # conv bias -> SMEM scalar
    smem_spec = pl.BlockSpec(memory_space=pltpu.MemorySpace.SMEM)

    s_aligned = _round_up(S, 128)

    # ---- fused single-pass path: 1R + 1W of x when the slab fits VMEM ----
    # live ~= 2x in + 2x out (stream dtype, double-buffered) + ~3 f32 temps.
    fused_live = (4 * itemsize + 12) * C * s_aligned
    if (not force_two_pass) and fused_live <= vmem_limit - (1 << 20):
        w1_k = w1.astype(jnp.float32)
        b1_k = b1.reshape(Cr, 1).astype(jnp.float32)
        w2_k = w2.astype(jnp.float32)
        b2_k = b2.reshape(C, 1).astype(jnp.float32)
        out = pl.pallas_call(
            partial(_fused_kernel, conv_on_mxu=conv_on_mxu, spatial=S,
                    has_tail=(s_aligned != S)),
            out_shape=jax.ShapeDtypeStruct((B, C, S), out_dtype),
            grid=(B,),
            in_specs=[
                pl.BlockSpec((1, C, s_aligned), lambda b: (b, 0, 0)),  # x slab
                pl.BlockSpec(wc_k.shape, lambda b: (0, 0)),            # conv weight
                smem_spec,                                             # conv bias
                pl.BlockSpec(w1_k.shape, lambda b: (0, 0)),            # fc1 weight
                pl.BlockSpec(b1_k.shape, lambda b: (0, 0)),            # fc1 bias
                pl.BlockSpec(w2_k.shape, lambda b: (0, 0)),            # fc2 weight
                pl.BlockSpec(b2_k.shape, lambda b: (0, 0)),            # fc2 bias
            ],
            out_specs=pl.BlockSpec((1, C, s_aligned), lambda b: (b, 0, 0)),
            compiler_params=pltpu.CompilerParams(
                dimension_semantics=("parallel",),
                vmem_limit_bytes=vmem_limit),
        )(x_cs, wc_k, bc_k, w1_k, b1_k, w2_k, b2_k)
        return out.reshape(B, C, D, H, W)

    # ---- two-pass streaming path ----
    tS, nS = _pick_tiling(S, C, itemsize, vmem_limit, max_tile_bytes)
    has_tail = (S % tS) != 0

    # phase 1: per-(batch, channel) spatial sums of cse, resident (1, C, 1) block.
    # TODO(synk): on v7x with B == 1, split the spatial axis into two "parallel"
    # halves (separate partial-sum outputs) so both TensorCores share the reduce.
    sums = pl.pallas_call(
        partial(_gate_sums_kernel, conv_on_mxu=conv_on_mxu, tile_s=tS,
                spatial=S, has_tail=has_tail),
        out_shape=jax.ShapeDtypeStruct((B, C, 1), jnp.float32),
        grid=(B, nS),
        in_specs=[
            pl.BlockSpec((1, C, tS), lambda b, s: (b, 0, s)),   # x tile
            pl.BlockSpec(wc_k.shape, lambda b, s: (0, 0)),      # conv weight
            smem_spec,                                          # conv bias (SMEM)
        ],
        out_specs=pl.BlockSpec((1, C, 1), lambda b, s: (b, 0, 0)),
        compiler_params=pltpu.CompilerParams(
            dimension_semantics=("parallel", "arbitrary"),
            vmem_limit_bytes=vmem_limit),
    )(x_cs, wc_k, bc_k)

    # tiny channel-SE MLP hoisted out of the kernel (once per batch, plain JAX)
    z = sums[:, :, 0] * jnp.float32(1.0 / S)                            # (B, C)
    h = jnp.maximum(z @ w1.astype(jnp.float32).T + b1.astype(jnp.float32), 0.0)
    g = jax.nn.sigmoid(h @ w2.astype(jnp.float32).T + b2.astype(jnp.float32))
    gate = g[:, :, None].astype(jnp.float32)                            # (B, C, 1)

    # phase 2: streamed apply, lane-dense output tiles.
    # TODO(synk): sweep pipeline_mode=pl.Buffered(3) on the x spec if a v7x
    # profile shows exposed DMA after the smaller-VMEM tile resize.
    out = pl.pallas_call(
        partial(_apply_kernel, conv_on_mxu=conv_on_mxu),
        out_shape=jax.ShapeDtypeStruct((B, C, S), out_dtype),
        grid=(B, nS),
        in_specs=[
            pl.BlockSpec((1, C, tS), lambda b, s: (b, 0, s)),   # x tile
            pl.BlockSpec(wc_k.shape, lambda b, s: (0, 0)),      # conv weight
            smem_spec,                                          # conv bias (SMEM)
            pl.BlockSpec((1, C, 1), lambda b, s: (b, 0, 0)),    # channel gate
        ],
        out_specs=pl.BlockSpec((1, C, tS), lambda b, s: (b, 0, s)),
        compiler_params=pltpu.CompilerParams(
            dimension_semantics=("parallel", "parallel"),
            vmem_limit_bytes=vmem_limit),
    )(x_cs, wc_k, bc_k, gate)

    return out.reshape(B, C, D, H, W)


# ---------------------------------------------------------------------------
# Reference + self-test
# ---------------------------------------------------------------------------

def ref_forward(x, params):
    """Pure-JAX reference matching the PyTorch module."""
    wc, bc, w1, b1, w2, b2 = params
    s = jax.nn.sigmoid(jnp.einsum('bcdhw,c->bdhw', x, wc) + bc)         # sSE gate
    cse = x * s[:, None, :, :, :]
    z = cse.mean(axis=(2, 3, 4))                                        # (B, C)
    h = jax.nn.relu(z @ w1.T + b1)
    g = jax.nn.sigmoid(h @ w2.T + b2)
    sse = cse * g[:, :, None, None, None]
    return jax.nn.relu(sse + x)


def _make_params(keys, C, Cr):
    # PyTorch-equivalent parameter shapes:
    #   sSE.conv: weight (1, C, 1, 1, 1) -> flattened (C,), bias ()
    #   cSE.fc1:  weight (Cr, C), bias (Cr,)
    #   cSE.fc2:  weight (C, Cr), bias (C,)
    wc = jax.random.normal(keys[0], (C,), jnp.float32) * 0.5
    bc = jax.random.normal(keys[1], (), jnp.float32) * 0.1
    w1 = jax.random.normal(keys[2], (Cr, C), jnp.float32) * 0.5
    b1 = jax.random.normal(keys[3], (Cr,), jnp.float32) * 0.1
    w2 = jax.random.normal(keys[4], (C, Cr), jnp.float32) * 0.5
    b2 = jax.random.normal(keys[5], (C,), jnp.float32) * 0.1
    return (wc, bc, w1, b1, w2, b2)


if __name__ == "__main__":
    # Case 1: 128-divisible spatial extent (S = 512); default dispatch takes
    # the fused single-pass path.
    B, C, D, H, W = 2, 4, 8, 8, 8
    ks = jax.random.split(jax.random.PRNGKey(0), 7)
    x = jax.random.normal(ks[0], (B, C, D, H, W), jnp.float32)
    params = _make_params(ks[1:], C, C // 2)
    ref = jax.block_until_ready(ref_forward(x, params))

    out = jax.block_until_ready(channel_spatial_se_3d(x, params))
    np.testing.assert_allclose(np.asarray(out), np.asarray(ref), rtol=1e-4, atol=1e-5)

    # Case 2: forced two-pass streaming with tiny tiles (tS=128, nS=4) to cover
    # the multi-tile accumulation + hoisted-MLP path.
    out2 = jax.block_until_ready(
        channel_spatial_se_3d(x, params, force_two_pass=True, max_tile_bytes=2048))
    np.testing.assert_allclose(np.asarray(out2), np.asarray(ref), rtol=1e-4, atol=1e-5)

    # Case 3: non-128-divisible spatial extent (S = 5*6*7 = 210) and odd channel
    # count -> cdiv grid + masked tail, on both the fused and two-pass paths.
    ks3 = jax.random.split(jax.random.PRNGKey(1), 7)
    x3 = jax.random.normal(ks3[0], (1, 6, 5, 6, 7), jnp.float32)
    params3 = _make_params(ks3[1:], 6, 3)
    ref3 = jax.block_until_ready(ref_forward(x3, params3))
    out3 = jax.block_until_ready(channel_spatial_se_3d(x3, params3))
    np.testing.assert_allclose(np.asarray(out3), np.asarray(ref3), rtol=1e-4, atol=1e-5)
    out3b = jax.block_until_ready(
        channel_spatial_se_3d(x3, params3, force_two_pass=True, max_tile_bytes=2048))
    np.testing.assert_allclose(np.asarray(out3b), np.asarray(ref3), rtol=1e-4, atol=1e-5)

    # Case 4: MXU-offloaded 1x1x1-conv contraction (the v7x path), validated on
    # whatever chip we run on (precision=HIGHEST; tolerance relaxed anyway).
    out4 = jax.block_until_ready(channel_spatial_se_3d(x, params, conv_on_mxu=True))
    np.testing.assert_allclose(np.asarray(out4), np.asarray(ref), rtol=2e-2, atol=2e-2)

    # Case 5: optional bf16 streaming (the v6e/v7x HBM-bandwidth path).
    out5 = jax.block_until_ready(
        channel_spatial_se_3d(x, params, stream_dtype=jnp.bfloat16, force_two_pass=True))
    out5_f32 = jax.block_until_ready(jnp.asarray(out5, jnp.float32))
    np.testing.assert_allclose(np.asarray(out5_f32), np.asarray(ref),
                               rtol=5e-2, atol=1e-1)

    print("KERNEL_OK")
</pallas_src>

<mosaic_0001>
module attributes {stable_mosaic.version = 11 : i64} {
  func.func @_fused_kernel(%arg0: i32, %arg1: memref<1x4x512xf32, #tpu.memory_space<vmem>>, %arg2: memref<4x1xf32, #tpu.memory_space<vmem>>, %arg3: memref<1xf32, #tpu.memory_space<smem>>, %arg4: memref<2x4xf32, #tpu.memory_space<vmem>>, %arg5: memref<2x1xf32, #tpu.memory_space<vmem>>, %arg6: memref<4x2xf32, #tpu.memory_space<vmem>>, %arg7: memref<4x1xf32, #tpu.memory_space<vmem>>, %arg8: memref<1x4x512xf32, #tpu.memory_space<vmem>>) attributes {dimension_semantics = [#tpu.dimension_semantics<parallel>], iteration_bounds = array<i64: 2>, scalar_prefetch = 0 : i64, scratch_operands = 0 : i64, tpu.core_type = #tpu.core_type<tc>, window_params = [{transform_indices = @transform_0, window_bounds = array<i64: 1, 4, 512>}, {pipeline_mode = #tpu.pipeline_mode<synchronous>, transform_indices = @transform_1, window_bounds = array<i64: 4, 1>}, {transform_indices = @transform_2, window_bounds = array<i64: 1>}, {pipeline_mode = #tpu.pipeline_mode<synchronous>, transform_indices = @transform_3, window_bounds = array<i64: 2, 4>}, {pipeline_mode = #tpu.pipeline_mode<synchronous>, transform_indices = @transform_4, window_bounds = array<i64: 2, 1>}, {pipeline_mode = #tpu.pipeline_mode<synchronous>, transform_indices = @transform_5, window_bounds = array<i64: 4, 2>}, {pipeline_mode = #tpu.pipeline_mode<synchronous>, transform_indices = @transform_6, window_bounds = array<i64: 4, 1>}, {transform_indices = @transform_7, window_bounds = array<i64: 1, 4, 512>}]} {
    %c0 = arith.constant 0 : index
    %c0_0 = arith.constant 0 : index
    %c0_1 = arith.constant 0 : index
    %0 = vector.load %arg1[%c0, %c0_0, %c0_1] : memref<1x4x512xf32, #tpu.memory_space<vmem>>, vector<1x4x512xf32>
    %1 = vector.shape_cast %0 : vector<1x4x512xf32> to vector<4x512xf32>
    %c0_2 = arith.constant 0 : index
    %c0_3 = arith.constant 0 : index
    %2 = vector.load %arg2[%c0_2, %c0_3] : memref<4x1xf32, #tpu.memory_space<vmem>>, vector<4x1xf32>
    %3 = vector.broadcast %2 : vector<4x1xf32> to vector<4x512xf32>
    %4 = arith.mulf %1, %3 : vector<4x512xf32>
    %cst = arith.constant dense<0.000000e+00> : vector<512xf32>
    %5 = vector.multi_reduction <add>, %4, %cst [0] : vector<4x512xf32> to vector<512xf32>
    %6 = vector.shape_cast %5 : vector<512xf32> to vector<1x512xf32>
    %c0_4 = arith.constant 0 : index
    %7 = memref.load %arg3[%c0_4] : memref<1xf32, #tpu.memory_space<smem>>
    %8 = vector.broadcast %7 : f32 to vector<1x512xf32>
    %9 = arith.addf %6, %8 : vector<1x512xf32>
    %10 = arith.negf %9 : vector<1x512xf32>
    %11 = math.exp %10 : vector<1x512xf32>
    %cst_5 = arith.constant 1.000000e+00 : f32
    %12 = vector.broadcast %cst_5 : f32 to vector<1x512xf32>
    %13 = arith.addf %12, %11 : vector<1x512xf32>
    %14 = arith.divf %12, %13 : vector<1x512xf32>
    %15 = vector.broadcast %14 : vector<1x512xf32> to vector<4x512xf32>
    %16 = arith.mulf %1, %15 : vector<4x512xf32>
    %cst_6 = arith.constant dense<0.000000e+00> : vector<4xf32>
    %17 = vector.multi_reduction <add>, %16, %cst_6 [1] : vector<4x512xf32> to vector<4xf32>
    %18 = vector.shape_cast %17 : vector<4xf32> to vector<4x1xf32>
    %cst_7 = arith.constant 0.001953125 : f32
    %19 = vector.broadcast %cst_7 : f32 to vector<4x1xf32>
    %20 = arith.mulf %18, %19 : vector<4x1xf32>
    %c0_8 = arith.constant 0 : index
    %c0_9 = arith.constant 0 : index
    %21 = vector.load %arg4[%c0_8, %c0_9] : memref<2x4xf32, #tpu.memory_space<vmem>>, vector<2x4xf32>
    %cst_10 = arith.constant dense<0.000000e+00> : vector<2x1xf32>
    %22 = tpu.matmul %21, %20, %cst_10 {dimension_numbers = #tpu.dot_dimension_numbers<[1], [0], [0], [1], [0, 0, 1, 1], [], []>} : vector<2x4xf32>, vector<4x1xf32>, vector<2x1xf32> -> vector<2x1xf32>
    %c0_11 = arith.constant 0 : index
    %c0_12 = arith.constant 0 : index
    %23 = vector.load %arg5[%c0_11, %c0_12] : memref<2x1xf32, #tpu.memory_space<vmem>>, vector<2x1xf32>
    %24 = arith.addf %22, %23 : vector<2x1xf32>
    %cst_13 = arith.constant 0.000000e+00 : f32
    %25 = vector.broadcast %cst_13 : f32 to vector<2x1xf32>
    %26 = arith.maximumf %24, %25 : vector<2x1xf32>
    %c0_14 = arith.constant 0 : index
    %c0_15 = arith.constant 0 : index
    %27 = vector.load %arg6[%c0_14, %c0_15] : memref<4x2xf32, #tpu.memory_space<vmem>>, vector<4x2xf32>
    %cst_16 = arith.constant dense<0.000000e+00> : vector<4x1xf32>
    %28 = tpu.matmul %27, %26, %cst_16 {dimension_numbers = #tpu.dot_dimension_numbers<[1], [0], [0], [1], [0, 0, 1, 1], [], []>} : vector<4x2xf32>, vector<2x1xf32>, vector<4x1xf32> -> vector<4x1xf32>
    %c0_17 = arith.constant 0 : index
    %c0_18 = arith.constant 0 : index
    %29 = vector.load %arg7[%c0_17, %c0_18] : memref<4x1xf32, #tpu.memory_space<vmem>>, vector<4x1xf32>
    %30 = arith.addf %28, %29 : vector<4x1xf32>
    %31 = arith.negf %30 : vector<4x1xf32>
    %32 = math.exp %31 : vector<4x1xf32>
    %cst_19 = arith.constant 1.000000e+00 : f32
    %33 = vector.broadcast %cst_19 : f32 to vector<4x1xf32>
    %34 = arith.addf %33, %32 : vector<4x1xf32>
    %35 = arith.divf %33, %34 : vector<4x1xf32>
    %36 = vector.broadcast %35 : vector<4x1xf32> to vector<4x512xf32>
    %37 = arith.mulf %16, %36 : vector<4x512xf32>
    %38 = arith.addf %37, %1 : vector<4x512xf32>
    %cst_20 = arith.constant 0.000000e+00 : f32
    %39 = vector.broadcast %cst_20 : f32 to vector<4x512xf32>
    %40 = arith.maximumf %38, %39 : vector<4x512xf32>
    %c0_21 = arith.constant 0 : index
    %c0_22 = arith.constant 0 : index
    %c0_23 = arith.constant 0 : index
    %41 = vector.load %arg8[%c0_21, %c0_22, %c0_23] : memref<1x4x512xf32, #tpu.memory_space<vmem>>, vector<1x4x512xf32>
    %42 = vector.shape_cast %41 : vector<1x4x512xf32> to vector<4x512xf32>
    %43 = vector.shape_cast %40 : vector<4x512xf32> to vector<1x4x512xf32>
    tpu.vector_store %arg8[%c0_21, %c0_22, %c0_23], %43 {strides = array<i32>} : memref<1x4x512xf32, #tpu.memory_space<vmem>>, vector<1x4x512xf32>,
    return
  }
  func.func @transform_0(%arg0: i32) -> (i32, i32, i32) {
    %c0_i32 = arith.constant 0 : i32
    %c0_i32_0 = arith.constant 0 : i32
    %c0_i32_1 = arith.constant 0 : i32
    return %arg0, %c0_i32, %c0_i32_0 : i32, i32, i32
  }
  func.func @transform_1(%arg0: i32) -> (i32, i32) {
    %c0_i32 = arith.constant 0 : i32
    %c0_i32_0 = arith.constant 0 : i32
    %c0_i32_1 = arith.constant 0 : i32
    return %c0_i32, %c0_i32_0 : i32, i32
  }
  func.func @transform_2(%arg0: i32) -> i32 {
    %c0_i32 = arith.constant 0 : i32
    %c0_i32_0 = arith.constant 0 : i32
    return %c0_i32 : i32
  }
  func.func @transform_3(%arg0: i32) -> (i32, i32) {
    %c0_i32 = arith.constant 0 : i32
    %c0_i32_0 = arith.constant 0 : i32
    %c0_i32_1 = arith.constant 0 : i32
    return %c0_i32, %c0_i32_0 : i32, i32
  }
  func.func @transform_4(%arg0: i32) -> (i32, i32) {
    %c0_i32 = arith.constant 0 : i32
    %c0_i32_0 = arith.constant 0 : i32
    %c0_i32_1 = arith.constant 0 : i32
    return %c0_i32, %c0_i32_0 : i32, i32
  }
  func.func @transform_5(%arg0: i32) -> (i32, i32) {
    %c0_i32 = arith.constant 0 : i32
    %c0_i32_0 = arith.constant 0 : i32
    %c0_i32_1 = arith.constant 0 : i32
    return %c0_i32, %c0_i32_0 : i32, i32
  }
  func.func @transform_6(%arg0: i32) -> (i32, i32) {
    %c0_i32 = arith.constant 0 : i32
    %c0_i32_0 = arith.constant 0 : i32
    %c0_i32_1 = arith.constant 0 : i32
    return %c0_i32, %c0_i32_0 : i32, i32
  }
  func.func @transform_7(%arg0: i32) -> (i32, i32, i32) {
    %c0_i32 = arith.constant 0 : i32
    %c0_i32_0 = arith.constant 0 : i32
    %c0_i32_1 = arith.constant 0 : i32
    return %arg0, %c0_i32, %c0_i32_0 : i32, i32, i32
  }
}

</mosaic_0001>

<llo_original>
// kernel: tpu_custom_call.1
$region0: #{tpu_custom_call.1}
  #allocation0 [shape = 'u32[]', space=smem, size = 0x4, offset = 0x4, fixed_abs, tag = 'smem constant byte address 0x4 - core index']
  #allocation1 [shape = 'u32[72,128]{1,0:T(1,128)}', space=vmem, size = 0x9000, scoped, tag = 'internal scratch']
  #allocation2 [shape = 'f32[1]{0:T(128)S(6)}', space=smem, size = 0x200, scoped, tag = 'scoped memory for tpu_custom_call.1']
  %s0 = inlined_call_operand.hbm [shape: f32[2,4,512], index: 0, kind: input, shape index: {}]
  %s1 = inlined_call_operand.vmem [shape: f32[4,1], index: 1, kind: input, shape index: {}]
  %s2 = inlined_call_operand.<no memory space> [shape: f32[1], index: 2, kind: input, shape index: {}]
  %s3 = inlined_call_operand.vmem [shape: f32[2,4], index: 3, kind: input, shape index: {}]
  %s4 = inlined_call_operand.vmem [shape: f32[2,1], index: 4, kind: input, shape index: {}]
  %s5 = inlined_call_operand.vmem [shape: f32[4,2], index: 5, kind: input, shape index: {}]
  %s6 = inlined_call_operand.vmem [shape: f32[4,1], index: 6, kind: input, shape index: {}]
  %s7 = inlined_call_operand.hbm [shape: f32[2,4,512], index: 7, kind: output, shape index: {}]
  %s8 = sld [smem:[#allocation0]]
  $region65: #{tpu_custom_call.1} parent=0
    _
  %s10 = ssub.s32 1, %s8
  %s11 = scalar_select 0, %s10, %s8
  %12 = sst [smem:[#allocation2]] %s2
  $region1: #{tpu_custom_call.1} parent=0
    #allocation3 [shape = 'u8[16384]{0}', space=vmem, size = 0x4000, scoped, tag = 'input window, operand 0']
    #allocation4 [shape = 's32[2]{0}', space=sflag, size = 0x8, scoped, tag = 'scoped memory for tpu_custom_call.1']
    #allocation5 [shape = 's32[2]{0}', space=sflag, size = 0x8, scoped, tag = 'scoped memory for tpu_custom_call.1']
    #allocation6 [shape = 'u8[16384]{0}', space=vmem, size = 0x4000, scoped, tag = 'output window, operand 0']
    %13 = vsyncpa [#allocation4], 0
    %s14 = scalar_lea.sflag [#allocation4], 1
    %15 = vsyncpa %s14, 0
    %16 = vsyncpa [#allocation5], 0
    %s17 = scalar_lea.sflag [#allocation5], 1
    %18 = vsyncpa %s17, 0
    loop: start=0, step=1, limit=4
    $region2: #{tpu_custom_call.1} parent=1 // loop_pre_header
      _
    $region3: #{tpu_custom_call.1} parent=1 // loop_header
      %s20 = sphi 0, %s24
      %p21 = scmp.ge.s32.totalorder %s20, 4
      %s30 = sphi 0, %s32
      %s33 = sphi 0, %s30
      %s34 = sphi 0, %s33
      %s50 = sphi 0, %s34
      %s54 = sphi 0, %s54
      %s56 = sphi 0, %s54
      %s57 = sphi 0, %s56
      %s71 = sphi 0, %s57
      %s75 = sphi 0, %s75
      %s77 = sphi 0, %s75
      %s78 = sphi 0, %s77
      %s92 = sphi 0, %s78
      %s96 = sphi 0, %s96
      %s98 = sphi 0, %s96
      %s99 = sphi 0, %s98
      %s113 = sphi 0, %s99
      %s117 = sphi 0, %s117
      %s119 = sphi 0, %s117
      %s120 = sphi 0, %s119
      %s134 = sphi 0, %s120
      %s138 = sphi 0, %s138
      %s140 = sphi 0, %s138
      %s141 = sphi 0, %s140
      %s155 = sphi 0, %s141
      %s159 = sphi 0, %s159
      %s161 = sphi 0, %s159
      %s162 = sphi 0, %s161
      %s176 = sphi 0, %s162
      %s182 = sphi 0, %s184
      %s185 = sphi 0, %s182
      %s186 = sphi 0, %s185
      %s202 = sphi 0, %s186
    $region4: #{tpu_custom_call.1} parent=1 // loop_header_branch
      %23 = sbr.rel (%p21) target = $region8
    $region5: #{tpu_custom_call.1} parent=1 // loop_body
      %s25 = ssub.s32 %s20, 1
      %s26 = ssub.s32 %s20, 2
      %s27 = sadd.s32 %s20, 1
      %s28 = ssub.s32 %s20, %s27
      %p29 = scmp.eq.s32.totalorder %s28, 0
      %s31 = sadd.s32 %s30, 1
      %s32 = scalar_select %p29, %s30, %s31
      %p35 = pneg %p29
      %p36 = scmp.eq.s32.totalorder %s20, 1
      %p37 = por %p35, %p36
      %p38 = scmp.ne.s32.totalorder %s30, %s33
      %p39 = scmp.eq.s32.totalorder %s20, 0
      %p40 = por %p38, %p39
      %p41 = scmp.ne.s32.totalorder %s30, %s33
      %p42 = scmp.eq.s32.totalorder %s25, 1
      %p43 = por %p41, %p42
      %p44 = scmp.ne.s32.totalorder %s33, %s34
      %p45 = scmp.eq.s32.totalorder %s25, 0
      %p46 = por %p44, %p45
      %p47 = scmp.ne.s32.totalorder %s33, %s34
      %p48 = scmp.eq.s32.totalorder %s26, 1
      %p49 = por %p47, %p48
      %p51 = scmp.ne.s32.totalorder %s34, %s50
      %p52 = scmp.eq.s32.totalorder %s26, 0
      %p53 = por %p51, %p52
      %s55 = sadd.s32 %s54, 1
      %p58 = scmp.eq.s32.totalorder %s20, 1
      %p59 = scmp.ne.s32.totalorder %s54, %s56
      %p60 = scmp.eq.s32.totalorder %s20, 0
      %p61 = por %p59, %p60
      %p62 = scmp.ne.s32.totalorder %s54, %s56
      %p63 = scmp.eq.s32.totalorder %s25, 1
      %p64 = por %p62, %p63
      %p65 = scmp.ne.s32.totalorder %s56, %s57
      %p66 = scmp.eq.s32.totalorder %s25, 0
      %p67 = por %p65, %p66
      %p68 = scmp.ne.s32.totalorder %s56, %s57
      %p69 = scmp.eq.s32.totalorder %s26, 1
      %p70 = por %p68, %p69
      %p72 = scmp.ne.s32.totalorder %s57, %s71
      %p73 = scmp.eq.s32.totalorder %s26, 0
      %p74 = por %p72, %p73
      %s76 = sadd.s32 %s75, 1
      %p79 = scmp.eq.s32.totalorder %s20, 1
      %p80 = scmp.ne.s32.totalorder %s75, %s77
      %p81 = scmp.eq.s32.totalorder %s20, 0
      %p82 = por %p80, %p81
      %p83 = scmp.ne.s32.totalorder %s75, %s77
      %p84 = scmp.eq.s32.totalorder %s25, 1
      %p85 = por %p83, %p84
      %p86 = scmp.ne.s32.totalorder %s77, %s78
      %p87 = scmp.eq.s32.totalorder %s25, 0
      %p88 = por %p86, %p87
      %p89 = scmp.ne.s32.totalorder %s77, %s78
      %p90 = scmp.eq.s32.totalorder %s26, 1
      %p91 = por %p89, %p90
      %p93 = scmp.ne.s32.totalorder %s78, %s92
      %p94 = scmp.eq.s32.totalorder %s26, 0
      %p95 = por %p93, %p94
      %s97 = sadd.s32 %s96, 1
      %p100 = scmp.eq.s32.totalorder %s20, 1
      %p101 = scmp.ne.s32.totalorder %s96, %s98
      %p102 = scmp.eq.s32.totalorder %s20, 0
      %p103 = por %p101, %p102
      %p104 = scmp.ne.s32.totalorder %s96, %s98
      %p105 = scmp.eq.s32.totalorder %s25, 1
      %p106 = por %p104, %p105
      %p107 = scmp.ne.s32.totalorder %s98, %s99
      %p108 = scmp.eq.s32.totalorder %s25, 0
      %p109 = por %p107, %p108
      %p110 = scmp.ne.s32.totalorder %s98, %s99
      %p111 = scmp.eq.s32.totalorder %s26, 1
      %p112 = por %p110, %p111
      %p114 = scmp.ne.s32.totalorder %s99, %s113
      %p115 = scmp.eq.s32.totalorder %s26, 0
      %p116 = por %p114, %p115
      %s118 = sadd.s32 %s117, 1
      %p121 = scmp.eq.s32.totalorder %s20, 1
      %p122 = scmp.ne.s32.totalorder %s117, %s119
      %p123 = scmp.eq.s32.totalorder %s20, 0
      %p124 = por %p122, %p123
      %p125 = scmp.ne.s32.totalorder %s117, %s119
      %p126 = scmp.eq.s32.totalorder %s25, 1
      %p127 = por %p125, %p126
      %p128 = scmp.ne.s32.totalorder %s119, %s120
      %p129 = scmp.eq.s32.totalorder %s25, 0
      %p130 = por %p128, %p129
      %p131 = scmp.ne.s32.totalorder %s119, %s120
      %p132 = scmp.eq.s32.totalorder %s26, 1
      %p133 = por %p131, %p132
      %p135 = scmp.ne.s32.totalorder %s120, %s134
      %p136 = scmp.eq.s32.totalorder %s26, 0
      %p137 = por %p135, %p136
      %s139 = sadd.s32 %s138, 1
      %p142 = scmp.eq.s32.totalorder %s20, 1
      %p143 = scmp.ne.s32.totalorder %s138, %s140
      %p144 = scmp.eq.s32.totalorder %s20, 0
      %p145 = por %p143, %p144
      %p146 = scmp.ne.s32.totalorder %s138, %s140
      %p147 = scmp.eq.s32.totalorder %s25, 1
      %p148 = por %p146, %p147
      %p149 = scmp.ne.s32.totalorder %s140, %s141
      %p150 = scmp.eq.s32.totalorder %s25, 0
      %p151 = por %p149, %p150
      %p152 = scmp.ne.s32.totalorder %s140, %s141
      %p153 = scmp.eq.s32.totalorder %s26, 1
      %p154 = por %p152, %p153
      %p156 = scmp.ne.s32.totalorder %s141, %s155
      %p157 = scmp.eq.s32.totalorder %s26, 0
      %p158 = por %p156, %p157
      %s160 = sadd.s32 %s159, 1
      %p163 = scmp.eq.s32.totalorder %s20, 1
      %p164 = scmp.ne.s32.totalorder %s159, %s161
      %p165 = scmp.eq.s32.totalorder %s20, 0
      %p166 = por %p164, %p165
      %p167 = scmp.ne.s32.totalorder %s159, %s161
      %p168 = scmp.eq.s32.totalorder %s25, 1
      %p169 = por %p167, %p168
      %p170 = scmp.ne.s32.totalorder %s161, %s162
      %p171 = scmp.eq.s32.totalorder %s25, 0
      %p172 = por %p170, %p171
      %p173 = scmp.ne.s32.totalorder %s161, %s162
      %p174 = scmp.eq.s32.totalorder %s26, 1
      %p175 = por %p173, %p174
      %p177 = scmp.ne.s32.totalorder %s162, %s176
      %p178 = scmp.eq.s32.totalorder %s26, 0
      %p179 = por %p177, %p178
      %s180 = ssub.s32 %s20, %s27
      %p181 = scmp.eq.s32.totalorder %s180, 0
      %s183 = sadd.s32 %s182, 1
      %s184 = scalar_select %p181, %s182, %s183
      %p187 = pneg %p181
      %p188 = scmp.eq.s32.totalorder %s20, 1
      %p189 = por %p187, %p188
      %p190 = scmp.ne.s32.totalorder %s182, %s185
      %p191 = scmp.eq.s32.totalorder %s20, 0
      %p192 = por %p190, %p191
      %p193 = scmp.ne.s32.totalorder %s182, %s185
      %p194 = scmp.eq.s32.totalorder %s25, 1
      %p195 = por %p193, %p194
      %p196 = scmp.ne.s32.totalorder %s185, %s186
      %p197 = scmp.eq.s32.totalorder %s25, 0
      %p198 = por %p196, %p197
      %p199 = scmp.ne.s32.totalorder %s185, %s186
      %p200 = scmp.eq.s32.totalorder %s26, 1
      %p201 = por %p199, %p200
      %p203 = scmp.ne.s32.totalorder %s186, %s202
      %p204 = scmp.eq.s32.totalorder %s26, 0
      %p205 = por %p203, %p204
      %p206 = scmp.le.s32.totalorder 1, %s20
      %p207 = scmp.lt.s32.totalorder %s20, 3
      %p208 = pnand %p206, %p207
      %p209 = pneg %p208
      // Predicated region
      $region9: #{tpu_custom_call.1} parent=5 // pred_check
        _
      $region10: #{tpu_custom_call.1} parent=5 // pred_check_branch
        %211 = sbr.rel (%p208) target = $region12
      $region11: #{tpu_custom_call.1} parent=5 // pred_region
        %s212 = ssub.s32 %s20, 1
        // Predicated region
        $region13: #{tpu_custom_call.1} parent=11 // pred_check
          %p213 = pneg %p67
        $region14: #{tpu_custom_call.1} parent=11 // pred_check_branch
          %215 = sbr.rel (%p213) target = $region16
        $region15: #{tpu_custom_call.1} parent=11 // pred_region
          _
        $region16: #{tpu_custom_call.1} parent=11 // pred_fallthru
          _
        // Predicated region
        $region17: #{tpu_custom_call.1} parent=11 // pred_check
          %p216 = pneg %p88
        $region18: #{tpu_custom_call.1} parent=11 // pred_check_branch
          %218 = sbr.rel (%p216) target = $region20
        $region19: #{tpu_custom_call.1} parent=11 // pred_region
          _
        $region20: #{tpu_custom_call.1} parent=11 // pred_fallthru
          _
        // Predicated region
        $region21: #{tpu_custom_call.1} parent=11 // pred_check
          %p219 = pneg %p109
        $region22: #{tpu_custom_call.1} parent=11 // pred_check_branch
          %221 = sbr.rel (%p219) target = $region24
        $region23: #{tpu_custom_call.1} parent=11 // pred_region
          _
        $region24: #{tpu_custom_call.1} parent=11 // pred_fallthru
          _
        // Predicated region
        $region25: #{tpu_custom_call.1} parent=11 // pred_check
          %p222 = pneg %p130
        $region26: #{tpu_custom_call.1} parent=11 // pred_check_branch
          %224 = sbr.rel (%p222) target = $region28
        $region27: #{tpu_custom_call.1} parent=11 // pred_region
          _
        $region28: #{tpu_custom_call.1} parent=11 // pred_fallthru
          _
        // Predicated region
        $region29: #{tpu_custom_call.1} parent=11 // pred_check
          %p225 = pneg %p151
        $region30: #{tpu_custom_call.1} parent=11 // pred_check_branch
          %227 = sbr.rel (%p225) target = $region32
        $region31: #{tpu_custom_call.1} parent=11 // pred_region
          _
        $region32: #{tpu_custom_call.1} parent=11 // pred_fallthru
          _
        // Predicated region
        $region33: #{tpu_custom_call.1} parent=11 // pred_check
          %p228 = pneg %p172
        $region34: #{tpu_custom_call.1} parent=11 // pred_check_branch
          %230 = sbr.rel (%p228) target = $region36
        $region35: #{tpu_custom_call.1} parent=11 // pred_region
          _
        $region36: #{tpu_custom_call.1} parent=11 // pred_fallthru
          _
      $region12: #{tpu_custom_call.1} parent=5 // pred_fallthru
        _
      %p231 = scmp.lt.s32.totalorder %s20, 2
      // Predicated region
      $region37: #{tpu_custom_call.1} parent=5 // pred_check
        %p232 = pneg %p231
      $region38: #{tpu_custom_call.1} parent=5 // pred_check_branch
        %234 = sbr.rel (%p232) target = $region40
      $region39: #{tpu_custom_call.1} parent=5 // pred_region
        // Predicated region
        $region41: #{tpu_custom_call.1} parent=39 // pred_check
          %p235 = pneg %p40
        $region42: #{tpu_custom_call.1} parent=39 // pred_check_branch
          %237 = sbr.rel (%p235) target = $region44
        $region43: #{tpu_custom_call.1} parent=39 // pred_region
          %s238 = sand.u32 %s30, 1
          %s239 = scalar_lea.sflag [#allocation4], %s238
          %s240 = sand.u32 %s30, 1
          %s241 = smul.addr %s240, 16
          %s242 = scalar_lea.vmem [#allocation3], %s241
          %244 = vsyncadd %s239, 0
          %s245 = smul.addr %s20, 4
          %s246 = smul.addr %s245, 4
          %s247 = scalar_lea.hbm %s0, %s246
          %s249 = sshll.u32 %s247, 4
          %s250 = int_to_ptr.hbm [resolvable:$true] %s249
          %s251 = sshll.u32 %s242, 4
          %s252 = int_to_ptr.vmem [resolvable:$true] %s251
          %254 = dma.hbm_to_vmem [thread:$0]  %s250, 256, %s252, %s239
        $region44: #{tpu_custom_call.1} parent=39 // pred_fallthru
          _
      $region40: #{tpu_custom_call.1} parent=5 // pred_fallthru
        _
      %p255 = scmp.le.s32.totalorder 1, %s20
      %p256 = scmp.lt.s32.totalorder %s20, 3
      %p257 = pnand %p255, %p256
      %p258 = pneg %p257
      // Predicated region
      $region45: #{tpu_custom_call.1} parent=5 // pred_check
        _
      $region46: #{tpu_custom_call.1} parent=5 // pred_check_branch
        %260 = sbr.rel (%p257) target = $region48
      $region47: #{tpu_custom_call.1} parent=5 // pred_region
        %s261 = ssub.s32 %s20, 1
        %s262 = sand.u32 %s33, 1
        %s263 = scalar_lea.sflag [#allocation4], %s262
        %s264 = sand.u32 %s33, 1
        %s265 = smul.addr %s264, 16
        %s266 = scalar_lea.vmem [#allocation3], %s265
        // Predicated region
        $region49: #{tpu_custom_call.1} parent=47 // pred_check
          %p267 = pneg %p46
        $region50: #{tpu_custom_call.1} parent=47 // pred_check_branch
          %269 = sbr.rel (%p267) target = $region52
        $region51: #{tpu_custom_call.1} parent=47 // pred_region
          %271 = dma.done %s263, 256
        $region52: #{tpu_custom_call.1} parent=47 // pred_fallthru
          _
        %s272 = sand.u32 %s33, 1
        %s273 = scalar_lea.sflag [#allocation4], %s272
        %s274 = sand.u32 %s33, 1
        %s275 = smul.addr %s274, 16
        %s276 = scalar_lea.vmem [#allocation3], %s275
        %p277 = pneg %p46
        %p278 = pneg %p43
        %p279 = pneg %p67
        %p280 = pneg %p64
        %p281 = pneg %p88
        %p282 = pneg %p85
        %p283 = pneg %p109
        %p284 = pneg %p106
        %p285 = pneg %p130
        %p286 = pneg %p127
        %p287 = pneg %p151
        %p288 = pneg %p148
        %p289 = pneg %p172
        %p290 = pneg %p169
        %p291 = pneg %p198
        %p292 = pneg %p195
        %s293 = sand.u32 %s185, 1
        %s294 = scalar_lea.sflag [#allocation5], %s293
        %s295 = sand.u32 %s185, 1
        %s296 = smul.addr %s295, 16
        %s297 = scalar_lea.vmem [#allocation6], %s296
        %v298 = vld [vmem:[%s266] sm:$0xff]
        %v299 = vld [vmem:[%s266 + $0x8] sm:$0xff]
        %v300 = vld [vmem:[%s1] sm:$0xf]
        %302 = vset.pattern.permute.xlu0 0
        %303 = vperm.xlu0 %302, %v300
        %v304 = vpop.permute.xlu0 %303
        %v306 = vunpack.c.l.s4 839922192
        %v307 = vunpack.c.0.s8 %v306
        %v308 = vperm.slane %v304, %v307
        %v310 = vmul.f32 %v298, %v308
        %v311 = vmul.f32 %v299, %v308
        %314 = vst [vmem:[#allocation1] ss:$2 sm:$0xff] %v310
        %s315 = scalar_lea.vmem [#allocation1], 16
        %316 = vst [vmem:[%s315] ss:$2 sm:$0xff] %v311
        %v317 = vld.sshfl [vmem:[#allocation1] sm:$0xff pattern:$0x75316420]
        %v318 = vld.sshfl [vmem:[#allocation1 + $0x8] sm:$0xff pattern:$0x75316420]
        %v319 = vld.sshfl [vmem:[#allocation1 + $0x10] sm:$0xff pattern:$0x75316420]
        %v320 = vld.sshfl [vmem:[#allocation1 + $0x18] sm:$0xff pattern:$0x75316420]
        %vm325 = vcmask 1043456
        %v326 = vsel %vm325, %v317, 0.0
        %v327 = vrot.slane %v326, 4
        %v328 = vadd.f32 %v326, %v327
        %v329 = vrot.slane %v328, 2
        %v330 = vadd.f32 %v328, %v329
        %v331 = vrot.slane %v330, 1
        %v332 = vadd.f32 %v330, %v331
        %v333 = vsel %vm325, %v318, 0.0
        %v334 = vrot.slane %v333, 4
        %v335 = vadd.f32 %v333, %v334
        %v336 = vrot.slane %v335, 2
        %v337 = vadd.f32 %v335, %v336
        %v338 = vrot.slane %v337, 1
        %v339 = vadd.f32 %v337, %v338
        %v340 = vsel %vm325, %v319, 0.0
        %v341 = vrot.slane %v340, 4
        %v342 = vadd.f32 %v340, %v341
        %v343 = vrot.slane %v342, 2
        %v344 = vadd.f32 %v342, %v343
        %v345 = vrot.slane %v344, 1
        %v346 = vadd.f32 %v344, %v345
        %v347 = vsel %vm325, %v320, 0.0
        %v348 = vrot.slane %v347, 4
        %v349 = vadd.f32 %v347, %v348
        %v350 = vrot.slane %v349, 2
        %v351 = vadd.f32 %v349, %v350
        %v352 = vrot.slane %v351, 1
        %v353 = vadd.f32 %v351, %v352
        %s354 = sld [smem:[#allocation2]]
        %v355 = vstv %s354
        %v356 = vadd.f32 %v332, %v355
        %v357 = vadd.f32 %v339, %v355
        %v358 = vadd.f32 %v346, %v355
        %v359 = vadd.f32 %v353, %v355
        %v360 = vxor.u32 %v356, 2147483648
        %v361 = vxor.u32 %v357, 2147483648
        %v362 = vxor.u32 %v358, 2147483648
        %v363 = vxor.u32 %v359, 2147483648
        %v364 = vmul.f32 %v360, 1.442695
        %v365 = vpow.pop %v364
        %v366 = vmul.f32 %v361, 1.442695
        %v367 = vpow.pop %v366
        %v368 = vmul.f32 %v362, 1.442695
        %v369 = vpow.pop %v368
        %v370 = vmul.f32 %v363, 1.442695
        %v371 = vpow.pop %v370
        %v372 = vadd.f32 %v365, 1.0
        %v373 = vadd.f32 %v367, 1.0
        %v374 = vadd.f32 %v369, 1.0
        %v375 = vadd.f32 %v371, 1.0
        %v376 = vrcp.pop %v372
        %v377 = vmul.f32 %v372, %v376
        %v378 = vsub.f32 1.0, %v377
        %v379 = vmul.f32 %v376, %v378
        %v380 = vadd.f32 %v376, %v379
        %vm381 = vweird.f32 %v372
        %vm382 = vweird.f32 %v376
        %vm383 = vmor %vm381, %vm382
        %v384 = vsel %vm383, %v376, %v380
        %v385 = vand.u32 2147483647, %v372
        %vm386 = vcmp.eq.f32.partialorder %v385, 8.507059e+37
        %v387 = vand.u32 %v372, 2147483648
        %v388 = vor.u32 1.1754944e-38, %v387
        %v389 = vsel %vm386, %v388, %v384
        %v390 = vmul.f32 1.0, %v389
        %v391 = vrcp.pop %v373
        %v392 = vmul.f32 %v373, %v391
        %v393 = vsub.f32 1.0, %v392
        %v394 = vmul.f32 %v391, %v393
        %v395 = vadd.f32 %v391, %v394
        %vm396 = vweird.f32 %v373
        %vm397 = vweird.f32 %v391
        %vm398 = vmor %vm396, %vm397
        %v399 = vsel %vm398, %v391, %v395
        %v400 = vand.u32 2147483647, %v373
        %vm401 = vcmp.eq.f32.partialorder %v400, 8.507059e+37
        %v402 = vand.u32 %v373, 2147483648
        %v403 = vor.u32 1.1754944e-38, %v402
        %v404 = vsel %vm401, %v403, %v399
        %v405 = vmul.f32 1.0, %v404
        %v406 = vrcp.pop %v374
        %v407 = vmul.f32 %v374, %v406
        %v408 = vsub.f32 1.0, %v407
        %v409 = vmul.f32 %v406, %v408
        %v410 = vadd.f32 %v406, %v409
        %vm411 = vweird.f32 %v374
        %vm412 = vweird.f32 %v406
        %vm413 = vmor %vm411, %vm412
        %v414 = vsel %vm413, %v406, %v410
        %v415 = vand.u32 2147483647, %v374
        %vm416 = vcmp.eq.f32.partialorder %v415, 8.507059e+37
        %v417 = vand.u32 %v374, 2147483648
        %v418 = vor.u32 1.1754944e-38, %v417
        %v419 = vsel %vm416, %v418, %v414
        %v420 = vmul.f32 1.0, %v419
        %v421 = vrcp.pop %v375
        %v422 = vmul.f32 %v375, %v421
        %v423 = vsub.f32 1.0, %v422
        %v424 = vmul.f32 %v421, %v423
        %v425 = vadd.f32 %v421, %v424
        %vm426 = vweird.f32 %v375
        %vm427 = vweird.f32 %v421
        %vm428 = vmor %vm426, %vm427
        %v429 = vsel %vm428, %v421, %v425
        %v430 = vand.u32 2147483647, %v375
        %vm431 = vcmp.eq.f32.partialorder %v430, 8.507059e+37
        %v432 = vand.u32 %v375, 2147483648
        %v433 = vor.u32 1.1754944e-38, %v432
        %v434 = vsel %vm431, %v433, %v429
        %v435 = vmul.f32 1.0, %v434
        %v440 = vrot.slane %v405, 4
        %v441 = vrot.slane %v435, 4
        %v442 = vsel %vm325, %v390, %v440
        %v443 = vsel %vm325, %v420, %v441
        %v446 = vmul.f32 %v298, %v442
        %v447 = vmul.f32 %v299, %v443
        %450 = vst [vmem:[#allocation1] ss:$2 sm:$0xff] %v446
        %s451 = scalar_lea.vmem [#allocation1], 16
        %452 = vst [vmem:[%s451] ss:$2 sm:$0xff] %v447
        %v453 = vld.sshfl [vmem:[#allocation1] sm:$0xff pattern:$0x75316420]
        %v454 = vld.sshfl [vmem:[#allocation1 + $0x8] sm:$0xff pattern:$0x75316420]
        %v455 = vld.sshfl [vmem:[#allocation1 + $0x10] sm:$0xff pattern:$0x75316420]
        %v456 = vld.sshfl [vmem:[#allocation1 + $0x18] sm:$0xff pattern:$0x75316420]
        %v461 = vsel %vm325, %v453, 0.0
        %v462 = vsel %vm325, %v454, 0.0
        %v463 = vadd.f32 %v461, %v462
        %v464 = vsel %vm325, %v455, 0.0
        %v465 = vadd.f32 %v463, %v464
        %v466 = vsel %vm325, %v456, 0.0
        %v467 = vadd.f32 %v465, %v466
        %468 = vadd.xlane.f32.xlu0 %v467
        %v469 = vpop.xlane.xlu0 %468
        %v470 = vmul.f32 %v469, 0.001953125
        %v471 = vld [vmem:[%s3] sm:$0x3]
        %v472 = vld [vmem:[%s4] sm:$0x3]
        %vm473 = vcmask 31744
        %v475 = vsel %vm473, %v471, 0
        %v478 = vsel %vm325, %v470, 0
        %480 = vmatpush.msra.mxu0 0.0
        %481 = vmatpush.msra.mxu0 0.0
        %482 = vmatpush.msra.mxu0 0.0
        %483 = vmatpush.msra.mxu0 0.0
        %484 = vmatpush.msra.mxu0 0.0
        %485 = vmatpush.msra.mxu0 0.0
        %486 = vmatpush.msra.mxu0 0.0
        %487 = vmatpush.msra.mxu0 0.0
        %488 = vmatpush.msra.mxu0 0.0
        %489 = vmatpush.msra.mxu0 0.0
        %490 = vmatpush.msra.mxu0 0.0
        %491 = vmatpush.msra.mxu0 0.0
        %492 = vmatpush.msra.mxu0 0.0
        %493 = vmatpush.msra.mxu0 0.0
        %494 = vmatpush.msra.mxu0 0.0
        %495 = vmatpush.msra.mxu0 %v478
        %496 = vmatmul.f32.gmra.mxu0 %v475
        %v497 = vpop.f32.mrf.mxu0
        %v498 = vadd.f32 %v472, %v497
        %499 = vdwg.mxu0
        %v500 = vmax.f32 %v498, 0.0
        %v501 = vld [vmem:[%s5] sm:$0xf]
        %v502 = vld [vmem:[%s6] sm:$0xf]
        %vm503 = vcmask 15360
        %v505 = vsel %vm503, %v501, 0
        %vm507 = vcmask 1041408
        %v509 = vsel %vm507, %v500, 0
        %511 = vmatpush.msra.mxu0 0.0
        %512 = vmatpush.msra.mxu0 0.0
        %513 = vmatpush.msra.mxu0 0.0
        %514 = vmatpush.msra.mxu0 0.0
        %515 = vmatpush.msra.mxu0 0.0
        %516 = vmatpush.msra.mxu0 0.0
        %517 = vmatpush.msra.mxu0 0.0
        %518 = vmatpush.msra.mxu0 0.0
        %519 = vmatpush.msra.mxu0 0.0
        %520 = vmatpush.msra.mxu0 0.0
        %521 = vmatpush.msra.mxu0 0.0
        %522 = vmatpush.msra.mxu0 0.0
        %523 = vmatpush.msra.mxu0 0.0
        %524 = vmatpush.msra.mxu0 0.0
        %525 = vmatpush.msra.mxu0 0.0
        %526 = vmatpush.msra.mxu0 %v509
        %527 = vmatmul.f32.gmra.mxu0 %v505
        %v528 = vpop.f32.mrf.mxu0
        %v529 = vadd.f32 %v502, %v528
        %530 = vdwg.mxu0
        %v531 = vxor.u32 %v529, 2147483648
        %v532 = vmul.f32 %v531, 1.442695
        %v533 = vpow.pop %v532
        %v534 = vadd.f32 %v533, 1.0
        %v535 = vrcp.pop %v534
        %v536 = vmul.f32 %v534, %v535
        %v537 = vsub.f32 1.0, %v536
        %v538 = vmul.f32 %v535, %v537
        %v539 = vadd.f32 %v535, %v538
        %vm540 = vweird.f32 %v534
        %vm541 = vweird.f32 %v535
        %vm542 = vmor %vm540, %vm541
        %v543 = vsel %vm542, %v535, %v539
        %v544 = vand.u32 2147483647, %v534
        %vm545 = vcmp.eq.f32.partialorder %v544, 8.507059e+37
        %v546 = vand.u32 %v534, 2147483648
        %v547 = vor.u32 1.1754944e-38, %v546
        %v548 = vsel %vm545, %v547, %v543
        %v549 = vmul.f32 1.0, %v548
        %551 = vset.pattern.permute.xlu0 0
        %552 = vperm.xlu0 %551, %v549
        %v553 = vpop.permute.xlu0 %552
        %v555 = vunpack.c.l.s4 839922192
        %v556 = vunpack.c.0.s8 %v555
        %v557 = vperm.slane %v553, %v556
        %v559 = vmul.f32 %v446, %v557
        %v560 = vmul.f32 %v447, %v557
        %v561 = vadd.f32 %v559, %v298
        %v562 = vadd.f32 %v560, %v299
        %v563 = vmax.f32 %v561, 0.0
        %v564 = vmax.f32 %v562, 0.0
        %565 = vst [vmem:[%s297] sm:$0xff] %v563
        %566 = vst [vmem:[%s297 + $0x8] sm:$0xff] %v564
        %s567 = sand.u32 %s185, 1
        %s568 = scalar_lea.sflag [#allocation5], %s567
        %s569 = sand.u32 %s185, 1
        %s570 = smul.addr %s569, 16
        %s571 = scalar_lea.vmem [#allocation6], %s570
        // Predicated region
        $region53: #{tpu_custom_call.1} parent=47 // pred_check
          %p572 = pneg %p195
        $region54: #{tpu_custom_call.1} parent=47 // pred_check_branch
          %574 = sbr.rel (%p572) target = $region56
        $region55: #{tpu_custom_call.1} parent=47 // pred_region
          %576 = vsyncadd %s568, 0
          %s577 = smul.addr %s25, 4
          %s578 = smul.addr %s577, 4
          %s579 = scalar_lea.hbm %s7, %s578
          %s581 = sshll.u32 %s571, 4
          %s582 = int_to_ptr.vmem [resolvable:$true] %s581
          %s583 = sshll.u32 %s579, 4
          %s584 = int_to_ptr.hbm [resolvable:$true] %s583
          %586 = dma.vmem_to_hbm [thread:$0]  %s582, 256, %s584, %s568
        $region56: #{tpu_custom_call.1} parent=47 // pred_fallthru
          _
      $region48: #{tpu_custom_call.1} parent=5 // pred_fallthru
        _
      %p587 = scmp.le.s32.totalorder 2, %s20
      // Predicated region
      $region57: #{tpu_custom_call.1} parent=5 // pred_check
        %p588 = pneg %p587
      $region58: #{tpu_custom_call.1} parent=5 // pred_check_branch
        %590 = sbr.rel (%p588) target = $region60
      $region59: #{tpu_custom_call.1} parent=5 // pred_region
        %s591 = ssub.s32 %s20, 2
        // Predicated region
        $region61: #{tpu_custom_call.1} parent=59 // pred_check
          %p592 = pneg %p201
        $region62: #{tpu_custom_call.1} parent=59 // pred_check_branch
          %594 = sbr.rel (%p592) target = $region64
        $region63: #{tpu_custom_call.1} parent=59 // pred_region
          %s595 = sand.u32 %s186, 1
          %s596 = scalar_lea.sflag [#allocation5], %s595
          %s597 = sand.u32 %s186, 1
          %s598 = smul.addr %s597, 16
          %s599 = scalar_lea.vmem [#allocation6], %s598
          %601 = dma.done %s596, 256
        $region64: #{tpu_custom_call.1} parent=59 // pred_fallthru
          _
      $region60: #{tpu_custom_call.1} parent=5 // pred_fallthru
        _
    $region6: #{tpu_custom_call.1} parent=1 // loop_footer
      %s24 = sadd.s32 1, %s20
    $region7: #{tpu_custom_call.1} parent=1 // loop_footer_branch
      %19 = sbr.rel target = $region3
    $region8: #{tpu_custom_call.1} parent=1 // loop_exit
      _
    %602 = vsyncpa [#allocation4], 1
    %s603 = scalar_lea.sflag [#allocation4], 1
    %604 = vsyncpa %s603, 1
    %605 = vsyncpa [#allocation5], 1
    %s606 = scalar_lea.sflag [#allocation5], 1
    %607 = vsyncpa %s606, 1

</llo_original>
